<compile_context>
chip_gen: v5e
topology: v5e:2x2
jax: 0.10.0
libtpu: 0.0.40
codegen_flags: <defaults>
</compile_context>

<pallas_src>
import functools

import jax
import jax.numpy as jnp
from jax.experimental import pallas as pl
from jax.experimental.pallas import tpu as pltpu

_LANE = 128
_MIB = 1024 * 1024


def _round_up(a, b):
    return ((a + b - 1) // b) * b


def _min_sublane(dtype):
    # Native vreg tile is (8, 128) for 32-bit; sub-32-bit packs along sublanes.
    return 8 * max(1, 4 // jnp.dtype(dtype).itemsize)


def _vmem_capacity_bytes():
    try:
        return int(pltpu.get_tpu_info().vmem_capacity_bytes)
    except Exception:
        return 128 * _MIB  # v5e/v6e physical; conservative fallback


def _working_set_bytes(tm, ti, hidden, d_out, w_isz, x_isz, o_isz):
    x_blk = 2 * tm * hidden * x_isz        # double-buffered activation block
    wgu_blk = 2 * hidden * 2 * ti * w_isz  # double-buffered gate|up slab
    wd_blk = 2 * ti * d_out * w_isz        # double-buffered down-proj rows
    out_blk = 2 * tm * d_out * o_isz       # double-buffered output block
    acc = tm * d_out * 4                   # f32 accumulator scratch
    gu_tmp = tm * 2 * ti * 4               # f32 MXU result before slicing
    act_tmp = tm * ti * max(w_isz, 2)      # silu(gate)*up tile
    return x_blk + wgu_blk + wd_blk + out_blk + acc + gu_tmp + act_tmp


def _mlp_kernel(x_ref, wgu_ref, wd_ref, o_ref, acc_ref):
    # x_ref  : [tm, hidden]
    # wgu_ref: [hidden, 2*ti]  contiguous fused (gate | up) slab for this i-tile
    # wd_ref : [ti, d_out]     down-projection rows for this i-tile
    # o_ref  : [tm, d_out]     output tile (written on the last i step)
    # acc_ref: [tm, d_out] f32 accumulator, persists across the i axis
    i = pl.program_id(1)

    @pl.when(i == 0)
    def _init():
        acc_ref[...] = jnp.zeros_like(acc_ref)

    # One MXU pass computes gate and up for this i-tile together.
    gu = jnp.dot(x_ref[...], wgu_ref[...], preferred_element_type=jnp.float32)
    ti = gu.shape[-1] // 2
    gate = gu[:, :ti]
    up = gu[:, ti:]
    # SiLU(gate) * up in f32, cast back to the weight dtype before the down
    # matmul (keeps the act tile small and MXU-native in bf16).
    act = (gate * jax.nn.sigmoid(gate) * up).astype(wd_ref.dtype)
    acc_ref[...] += jnp.dot(act, wd_ref[...], preferred_element_type=jnp.float32)

    @pl.when(i == pl.num_programs(1) - 1)
    def _finalize():
        o_ref[...] = acc_ref[...].astype(o_ref.dtype)


def prepare_mistral_mlp_weights(w_gate, w_up, w_down, *, ti=None,
                                compute_dtype=None):
    """One-time weight preprocessing (hoisted out of the forward hot path).

    w_gate : [I_gate, hidden]   (PyTorch nn.Linear weight layout)
    w_up   : [I_up,   hidden]
    w_down : [D_out,  max(I_gate, I_up)]
    compute_dtype : optional cast (e.g. jnp.bfloat16) for the hot path.

    Returns (wgu, wd_t, ti):
      wgu  : [n_i, hidden, 2*ti]  per-i-tile contiguous (gate | up), transposed
      wd_t : [i_pad, d_out]       down weight, transposed and zero-padded
    """
    i_gate, hidden = w_gate.shape
    i_up = w_up.shape[0]
    i_max = max(i_gate, i_up)
    d_out = w_down.shape[0]
    assert w_down.shape[1] == i_max

    dt = jnp.dtype(compute_dtype) if compute_dtype is not None else jnp.dtype(w_gate.dtype)
    w_isz = dt.itemsize

    if ti is None:
        vmem = _vmem_capacity_bytes()
        budget = int(0.85 * vmem)
        # Big-VMEM parts: weight double-buffers may take half the budget.
        # v7x (64 MiB): keep them to a third and shrink ti -- not tm -- when
        # tight, so the token tile stays above the roofline knee.
        weight_share = budget // 2 if vmem >= 100 * _MIB else budget // 3
        ti = 1024 if vmem >= 100 * _MIB else 512
        while ti > _LANE and 2 * (hidden * 2 * ti + ti * d_out) * w_isz > weight_share:
            ti //= 2
    ti = max(_LANE, min(_round_up(ti, _LANE), _round_up(i_max, _LANE)))

    i_pad = _round_up(i_max, ti)
    n_i = i_pad // ti

    # Zero-padding the weight rows/cols reproduces F.pad on the activations
    # exactly: padded positions give silu(0)*0 = 0 through zero w_down rows.
    wg_t = jnp.zeros((hidden, i_pad), dt).at[:, :i_gate].set(w_gate.T.astype(dt))
    wu_t = jnp.zeros((hidden, i_pad), dt).at[:, :i_up].set(w_up.T.astype(dt))
    wd_t = jnp.zeros((i_pad, d_out), dt).at[:i_max, :].set(w_down.T.astype(dt))

    # [n_i, hidden, 2*ti]: each grid step reads ONE fully contiguous HBM slab
    # [gate_tile_k | up_tile_k] instead of 'hidden' strided rows.
    wgu = jnp.concatenate(
        [wg_t.reshape(hidden, n_i, ti), wu_t.reshape(hidden, n_i, ti)], axis=-1
    ).transpose(1, 0, 2)
    return wgu, wd_t, ti


def mistral_mlp_fused(x, wgu, wd_t, *, ti, tm=None):
    """Fused MLP on prepared weights.  x: [batch, seq, hidden]."""
    batch, seq, hidden = x.shape
    n_i, hidden_w, two_ti = wgu.shape
    assert hidden_w == hidden and two_ti == 2 * ti
    i_pad, d_out = wd_t.shape
    assert i_pad == n_i * ti

    compute_dtype = wgu.dtype
    out_dtype = x.dtype
    tokens = batch * seq
    x2d = x.reshape(tokens, hidden).astype(compute_dtype)

    w_isz = jnp.dtype(compute_dtype).itemsize
    o_isz = jnp.dtype(out_dtype).itemsize
    min_sub = max(_min_sublane(compute_dtype), _min_sublane(out_dtype))

    vmem = _vmem_capacity_bytes()
    vmem_limit = int(0.85 * vmem)            # ~108 MiB on v5e/v6e, ~54 MiB on v7x
    budget = vmem_limit - 6 * _MIB           # headroom for compiler scratch

    if tm is None:
        # Arithmetic intensity over streamed weights ~= 2*tm/itemsize FLOP/byte;
        # v6e needs ~650 (bf16 -> tm~768), v7x needs ~310 (tm~512).
        tm = 768 if vmem >= 100 * _MIB else 512
    tm = min(tm, _round_up(tokens, min_sub))
    tm = max(min_sub, _round_up(tm, min_sub))
    while tm > min_sub and _working_set_bytes(
            tm, ti, hidden, d_out, w_isz, w_isz, o_isz) > budget:
        tm = max(min_sub, _round_up(tm // 2, min_sub))

    n_m = pl.cdiv(tokens, tm)  # ragged last tile: Pallas masks the partial block

    flops = 2 * tokens * hidden * 2 * i_pad + 2 * tokens * i_pad * d_out
    bytes_accessed = (
        x2d.size * w_isz
        + n_m * (wgu.size + wd_t.size) * w_isz
        + tokens * d_out * o_isz
    )

    out2d = pl.pallas_call(
        _mlp_kernel,
        out_shape=jax.ShapeDtypeStruct((tokens, d_out), out_dtype),
        grid_spec=pltpu.PrefetchScalarGridSpec(
            num_scalar_prefetch=0,
            grid=(n_m, n_i),                                   # reduction axis last
            in_specs=[
                pl.BlockSpec((tm, hidden), lambda m, i: (m, 0)),
                pl.BlockSpec((None, hidden, 2 * ti), lambda m, i: (i, 0, 0)),
                pl.BlockSpec((ti, d_out), lambda m, i: (i, 0)),
            ],
            out_specs=pl.BlockSpec((tm, d_out), lambda m, i: (m, 0)),
            scratch_shapes=[pltpu.VMEM((tm, d_out), jnp.float32)],
        ),
        compiler_params=pltpu.CompilerParams(
            dimension_semantics=("parallel", "arbitrary"),
            vmem_limit_bytes=vmem_limit,
        ),
        cost_estimate=pl.CostEstimate(
            flops=flops,
            transcendentals=tokens * i_pad,
            bytes_accessed=bytes_accessed,
        ),
    )(x2d, wgu, wd_t)

    return out2d.reshape(batch, seq, d_out)


def dynamic_threshold_mistral_mlp(x, w_gate, w_up, w_down, *, tm=None, ti=None,
                                  compute_dtype=None):
    """Convenience wrapper matching the PyTorch module's forward.

    Prefer calling prepare_mistral_mlp_weights once (per update_parameters)
    and mistral_mlp_fused per forward; this one-shot wrapper should be jitted
    so the weight prep is not re-materialized per step.
    """
    wgu, wd_t, ti = prepare_mistral_mlp_weights(
        w_gate, w_up, w_down, ti=ti, compute_dtype=compute_dtype)
    return mistral_mlp_fused(x, wgu, wd_t, ti=ti, tm=tm)


def _reference(x, w_gate, w_up, w_down):
    gate = jnp.einsum("bsh,ih->bsi", x, w_gate)
    up = jnp.einsum("bsh,ih->bsi", x, w_up)
    i_max = max(gate.shape[-1], up.shape[-1])
    gate = jnp.pad(gate, ((0, 0), (0, 0), (0, i_max - gate.shape[-1])))
    up = jnp.pad(up, ((0, 0), (0, 0), (0, i_max - up.shape[-1])))
    act = jax.nn.silu(gate) * up
    return jnp.einsum("bsi,oi->bso", act, w_down)


if __name__ == "__main__":
    # Small deterministic shapes; seq=9 makes tokens=18 exercise the ragged
    # (non-multiple-of-tile) last token block.
    batch, seq, hidden = 2, 9, 32
    i_gate, i_up = 48, 64           # different sizes -> exercises the dynamic padding
    i_max = max(i_gate, i_up)
    d_out = hidden

    key = jax.random.PRNGKey(0)
    kx, kg, ku, kd = jax.random.split(key, 4)
    x = jax.random.normal(kx, (batch, seq, hidden), dtype=jnp.float32)
    w_gate = jax.random.normal(kg, (i_gate, hidden), dtype=jnp.float32) * 0.05
    w_up = jax.random.normal(ku, (i_up, hidden), dtype=jnp.float32) * 0.05
    w_down = jax.random.normal(kd, (d_out, i_max), dtype=jnp.float32) * 0.05

    ref = _reference(x, w_gate, w_up, w_down)

    # Hot path, f32: weights prepared once, kernel-only forward is jitted.
    wgu, wd_t, ti = prepare_mistral_mlp_weights(w_gate, w_up, w_down)
    mlp = jax.jit(functools.partial(mistral_mlp_fused, ti=ti))
    out = jax.block_until_ready(mlp(x, wgu, wd_t))
    assert out.shape == (batch, seq, d_out)
    assert jnp.allclose(out, ref, atol=1e-4, rtol=1e-4)

    # Hot path, bf16 (recommended production path: halves weight DMA & VMEM).
    wgu_bf, wd_bf, ti_bf = prepare_mistral_mlp_weights(
        w_gate, w_up, w_down, compute_dtype=jnp.bfloat16)
    mlp_bf = jax.jit(functools.partial(mistral_mlp_fused, ti=ti_bf))
    out_bf = jax.block_until_ready(mlp_bf(x, wgu_bf, wd_bf))
    assert jnp.allclose(out_bf.astype(jnp.float32), ref, atol=5e-2, rtol=5e-2)

    # Convenience one-shot wrapper (jitted) should match too.
    out2 = jax.block_until_ready(
        jax.jit(dynamic_threshold_mistral_mlp)(x, w_gate, w_up, w_down))
    assert jnp.allclose(out2, ref, atol=1e-4, rtol=1e-4)

    print("KERNEL_OK")
</pallas_src>

<mosaic_0001>
module attributes {stable_mosaic.version = 11 : i64} {
  func.func @_mlp_kernel(%arg0: i32, %arg1: i32, %arg2: memref<24x32xf32, #tpu.memory_space<vmem>>, %arg3: memref<1x32x256xf32, #tpu.memory_space<vmem>>, %arg4: memref<128x32xf32, #tpu.memory_space<vmem>>, %arg5: memref<24x32xf32, #tpu.memory_space<vmem>>, %arg6: memref<24x32xf32, #tpu.memory_space<vmem>>) attributes {dimension_semantics = [#tpu.dimension_semantics<parallel>, #tpu.dimension_semantics<arbitrary>], iteration_bounds = array<i64: 1, 1>, scalar_prefetch = 0 : i64, scratch_operands = 1 : i64, tpu.core_type = #tpu.core_type<tc>, window_params = [{transform_indices = @transform_0, window_bounds = array<i64: 24, 32>}, {transform_indices = @transform_1, window_bounds = array<i64: 1, 32, 256>}, {transform_indices = @transform_2, window_bounds = array<i64: 128, 32>}, {transform_indices = @transform_3, window_bounds = array<i64: 24, 32>}]} {
    %c0_i32 = arith.constant 0 : i32
    %0 = arith.cmpi eq, %arg1, %c0_i32 : i32
    %1 = arith.extui %0 : i1 to i32
    %c0_i32_0 = arith.constant 0 : i32
    %2 = arith.cmpi ne, %1, %c0_i32_0 : i32
    scf.if %2 {
      %cst_15 = arith.constant 0.000000e+00 : f32
      %24 = vector.broadcast %cst_15 : f32 to vector<24x32xf32>
      %c0_16 = arith.constant 0 : index
      %c0_17 = arith.constant 0 : index
      %25 = vector.load %arg6[%c0_16, %c0_17] : memref<24x32xf32, #tpu.memory_space<vmem>>, vector<24x32xf32>
      tpu.vector_store %arg6[%c0_16, %c0_17], %24 {strides = array<i32>} : memref<24x32xf32, #tpu.memory_space<vmem>>, vector<24x32xf32>,
    } else {
    }
    %c0 = arith.constant 0 : index
    %c0_1 = arith.constant 0 : index
    %3 = vector.load %arg2[%c0, %c0_1] : memref<24x32xf32, #tpu.memory_space<vmem>>, vector<24x32xf32>
    %c0_2 = arith.constant 0 : index
    %c0_3 = arith.constant 0 : index
    %c0_4 = arith.constant 0 : index
    %4 = vector.load %arg3[%c0_2, %c0_3, %c0_4] : memref<1x32x256xf32, #tpu.memory_space<vmem>>, vector<1x32x256xf32>
    %5 = vector.shape_cast %4 : vector<1x32x256xf32> to vector<32x256xf32>
    %cst = arith.constant dense<0.000000e+00> : vector<24x256xf32>
    %6 = tpu.matmul %3, %5, %cst {dimension_numbers = #tpu.dot_dimension_numbers<[1], [0], [0], [1], [0, 0, 1, 1], [], []>} : vector<24x32xf32>, vector<32x256xf32>, vector<24x256xf32> -> vector<24x256xf32>
    %7 = vector.extract_strided_slice %6 {offsets = [0, 0], sizes = [24, 128], strides = [1, 1]} : vector<24x256xf32> to vector<24x128xf32>
    %8 = vector.extract_strided_slice %6 {offsets = [0, 128], sizes = [24, 128], strides = [1, 1]} : vector<24x256xf32> to vector<24x128xf32>
    %9 = arith.negf %7 : vector<24x128xf32>
    %10 = math.exp %9 : vector<24x128xf32>
    %cst_5 = arith.constant 1.000000e+00 : f32
    %11 = vector.broadcast %cst_5 : f32 to vector<24x128xf32>
    %12 = arith.addf %11, %10 : vector<24x128xf32>
    %13 = arith.divf %11, %12 : vector<24x128xf32>
    %14 = arith.mulf %7, %13 : vector<24x128xf32>
    %15 = arith.mulf %14, %8 : vector<24x128xf32>
    %c0_6 = arith.constant 0 : index
    %c0_7 = arith.constant 0 : index
    %16 = vector.load %arg6[%c0_6, %c0_7] : memref<24x32xf32, #tpu.memory_space<vmem>>, vector<24x32xf32>
    %c0_8 = arith.constant 0 : index
    %c0_9 = arith.constant 0 : index
    %17 = vector.load %arg4[%c0_8, %c0_9] : memref<128x32xf32, #tpu.memory_space<vmem>>, vector<128x32xf32>
    %cst_10 = arith.constant dense<0.000000e+00> : vector<24x32xf32>
    %18 = tpu.matmul %15, %17, %cst_10 {dimension_numbers = #tpu.dot_dimension_numbers<[1], [0], [0], [1], [0, 0, 1, 1], [], []>} : vector<24x128xf32>, vector<128x32xf32>, vector<24x32xf32> -> vector<24x32xf32>
    %19 = arith.addf %16, %18 : vector<24x32xf32>
    %c0_11 = arith.constant 0 : index
    %c0_12 = arith.constant 0 : index
    %20 = vector.load %arg6[%c0_11, %c0_12] : memref<24x32xf32, #tpu.memory_space<vmem>>, vector<24x32xf32>
    tpu.vector_store %arg6[%c0_11, %c0_12], %19 {strides = array<i32>} : memref<24x32xf32, #tpu.memory_space<vmem>>, vector<24x32xf32>,
    %c0_i32_13 = arith.constant 0 : i32
    %21 = arith.cmpi eq, %arg1, %c0_i32_13 : i32
    %22 = arith.extui %21 : i1 to i32
    %c0_i32_14 = arith.constant 0 : i32
    %23 = arith.cmpi ne, %22, %c0_i32_14 : i32
    scf.if %23 {
      %c0_15 = arith.constant 0 : index
      %c0_16 = arith.constant 0 : index
      %24 = vector.load %arg6[%c0_15, %c0_16] : memref<24x32xf32, #tpu.memory_space<vmem>>, vector<24x32xf32>
      %c0_17 = arith.constant 0 : index
      %c0_18 = arith.constant 0 : index
      %25 = vector.load %arg5[%c0_17, %c0_18] : memref<24x32xf32, #tpu.memory_space<vmem>>, vector<24x32xf32>
      tpu.vector_store %arg5[%c0_17, %c0_18], %24 {strides = array<i32>} : memref<24x32xf32, #tpu.memory_space<vmem>>, vector<24x32xf32>,
    } else {
    }
    return
  }
  func.func @transform_0(%arg0: i32, %arg1: i32) -> (i32, i32) {
    %c0_i32 = arith.constant 0 : i32
    %c0_i32_0 = arith.constant 0 : i32
    return %arg0, %c0_i32 : i32, i32
  }
  func.func @transform_1(%arg0: i32, %arg1: i32) -> (i32, i32, i32) {
    %c0_i32 = arith.constant 0 : i32
    %c0_i32_0 = arith.constant 0 : i32
    %c0_i32_1 = arith.constant 0 : i32
    return %arg1, %c0_i32, %c0_i32_0 : i32, i32, i32
  }
  func.func @transform_2(%arg0: i32, %arg1: i32) -> (i32, i32) {
    %c0_i32 = arith.constant 0 : i32
    %c0_i32_0 = arith.constant 0 : i32
    return %arg1, %c0_i32 : i32, i32
  }
  func.func @transform_3(%arg0: i32, %arg1: i32) -> (i32, i32) {
    %c0_i32 = arith.constant 0 : i32
    %c0_i32_0 = arith.constant 0 : i32
    return %arg0, %c0_i32 : i32, i32
  }
}

</mosaic_0001>

<llo_original>
// kernel: mistral_mlp_fused.1
$region0: #{mistral_mlp_fused.1}
  #allocation0 [shape = 'u32[]', space=smem, size = 0x4, offset = 0x4, fixed_abs, tag = 'smem constant byte address 0x4 - core index']
  #allocation1 [shape = 'u32[72,128]{1,0:T(1,128)}', space=vmem, size = 0x9000, scoped, tag = 'internal scratch']
  #allocation2 [shape = 'f32[24,32]{1,0:T(8,128)}', space=vmem, size = 0x3000, scoped, tag = 'scratch operand']
  %s0 = inlined_call_operand.vmem [shape: f32[18,32], index: 0, kind: input, shape index: {}]
  %s1 = inlined_call_operand.vmem [shape: f32[1,32,256], index: 1, kind: input, shape index: {}]
  %s2 = inlined_call_operand.vmem [shape: f32[128,32], index: 2, kind: input, shape index: {}]
  %s3 = inlined_call_operand.vmem [shape: f32[18,32], index: 3, kind: output, shape index: {}]
  %s4 = sld [smem:[#allocation0]]
  $region30: #{mistral_mlp_fused.1} parent=0
    _
  %s6 = ssub.s32 1, %s4
  %s7 = scalar_select 0, %s6, %s4
  // Predicated region
  $region2: #{mistral_mlp_fused.1} parent=0 // pred_check
    _
  $region3: #{mistral_mlp_fused.1} parent=0 // pred_check_branch
    %9 = sbr.rel (0) target = $region5
  $region4: #{mistral_mlp_fused.1} parent=0 // pred_region
    _
  $region5: #{mistral_mlp_fused.1} parent=0 // pred_fallthru
    _
  // Predicated region
  $region6: #{mistral_mlp_fused.1} parent=0 // pred_check
    _
  $region7: #{mistral_mlp_fused.1} parent=0 // pred_check_branch
    %11 = sbr.rel (0) target = $region9
  $region8: #{mistral_mlp_fused.1} parent=0 // pred_region
    _
  $region9: #{mistral_mlp_fused.1} parent=0 // pred_fallthru
    _
  // Predicated region
  $region10: #{mistral_mlp_fused.1} parent=0 // pred_check
    _
  $region11: #{mistral_mlp_fused.1} parent=0 // pred_check_branch
    %13 = sbr.rel (0) target = $region13
  $region12: #{mistral_mlp_fused.1} parent=0 // pred_region
    _
  $region13: #{mistral_mlp_fused.1} parent=0 // pred_fallthru
    _
  %p14 = scmp.eq.s32.totalorder 0, 0
  // Predicated region
  $region14: #{mistral_mlp_fused.1} parent=0 // pred_check
    %p15 = pneg %p14
  $region15: #{mistral_mlp_fused.1} parent=0 // pred_check_branch
    %17 = sbr.rel (%p15) target = $region17
  $region16: #{mistral_mlp_fused.1} parent=0 // pred_region
    %vm18 = vcmask 261120
    %19 = vst.msk [vmem:[#allocation2] sm:$0xff] %vm18, 0.0
    %20 = vst.msk [vmem:[#allocation2 + $0x8] sm:$0xff] %vm18, 0.0
    %21 = vst.msk [vmem:[#allocation2 + $0x10] sm:$0xff] %vm18, 0.0
  $region17: #{mistral_mlp_fused.1} parent=0 // pred_fallthru
    _
  %v22 = vld [vmem:[%s0] sm:$0xff]
  %v23 = vld [vmem:[%s0 + $0x8] sm:$0xff]
  %v24 = vld [vmem:[%s0 + $0x10] sm:$0xff]
  %v25 = vld [vmem:[%s1] sm:$0xff]
  %v26 = vld [vmem:[%s1 + $0x8] sm:$0xff]
  %v27 = vld [vmem:[%s1 + $0x10] sm:$0xff]
  %v28 = vld [vmem:[%s1 + $0x18] sm:$0xff]
  %v29 = vld [vmem:[%s1 + $0x20] sm:$0xff]
  %v30 = vld [vmem:[%s1 + $0x28] sm:$0xff]
  %v31 = vld [vmem:[%s1 + $0x30] sm:$0xff]
  %v32 = vld [vmem:[%s1 + $0x38] sm:$0xff]
  %vm33 = vcmask 261120
  %v35 = vsel %vm33, %v22, 0
  %v38 = vsel %vm33, %v23, 0
  %v41 = vsel %vm33, %v24, 0
  %43 = vmatpush.msra.mxu0 0.0
  %44 = vmatpush.msra.mxu0 0.0
  %45 = vmatpush.msra.mxu0 0.0
  %46 = vmatpush.msra.mxu0 0.0
  %47 = vmatpush.msra.mxu0 0.0
  %48 = vmatpush.msra.mxu0 0.0
  %49 = vmatpush.msra.mxu0 0.0
  %50 = vmatpush.msra.mxu0 0.0
  %51 = vmatpush.msra.mxu0 0.0
  %52 = vmatpush.msra.mxu0 0.0
  %53 = vmatpush.msra.mxu0 0.0
  %54 = vmatpush.msra.mxu0 0.0
  %55 = vmatpush.msra.mxu0 %v31
  %56 = vmatpush.msra.mxu0 %v29
  %57 = vmatpush.msra.mxu0 %v27
  %58 = vmatpush.msra.mxu0 %v25
  %59 = vmatmul.f32.gmra.mxu0 %v35
  %v60 = vpop.f32.mrf.mxu0
  %v61 = vadd.f32 0.0, %v60
  %62 = vmatmul.f32.gmra.mxu0 %v38
  %v63 = vpop.f32.mrf.mxu0
  %v64 = vadd.f32 0.0, %v63
  %65 = vmatmul.f32.gmra.mxu0 %v41
  %v66 = vpop.f32.mrf.mxu0
  %v67 = vadd.f32 0.0, %v66
  %68 = vdwg.mxu0
  %69 = vmatpush.msra.mxu0 0.0
  %70 = vmatpush.msra.mxu0 0.0
  %71 = vmatpush.msra.mxu0 0.0
  %72 = vmatpush.msra.mxu0 0.0
  %73 = vmatpush.msra.mxu0 0.0
  %74 = vmatpush.msra.mxu0 0.0
  %75 = vmatpush.msra.mxu0 0.0
  %76 = vmatpush.msra.mxu0 0.0
  %77 = vmatpush.msra.mxu0 0.0
  %78 = vmatpush.msra.mxu0 0.0
  %79 = vmatpush.msra.mxu0 0.0
  %80 = vmatpush.msra.mxu0 0.0
  %81 = vmatpush.msra.mxu0 %v32
  %82 = vmatpush.msra.mxu0 %v30
  %83 = vmatpush.msra.mxu0 %v28
  %84 = vmatpush.msra.mxu0 %v26
  %85 = vmatmul.f32.gmra.mxu0 %v35
  %v86 = vpop.f32.mrf.mxu0
  %v87 = vadd.f32 0.0, %v86
  %88 = vmatmul.f32.gmra.mxu0 %v38
  %v89 = vpop.f32.mrf.mxu0
  %v90 = vadd.f32 0.0, %v89
  %91 = vmatmul.f32.gmra.mxu0 %v41
  %v92 = vpop.f32.mrf.mxu0
  %v93 = vadd.f32 0.0, %v92
  %94 = vdwg.mxu0
  %v95 = vxor.u32 %v61, 2147483648
  %v96 = vxor.u32 %v64, 2147483648
  %v97 = vxor.u32 %v67, 2147483648
  %v98 = vmul.f32 %v95, 1.442695
  %v99 = vpow.pop %v98
  %v100 = vmul.f32 %v96, 1.442695
  %v101 = vpow.pop %v100
  %v102 = vmul.f32 %v97, 1.442695
  %v103 = vpow.pop %v102
  %v104 = vadd.f32 %v99, 1.0
  %v105 = vadd.f32 %v101, 1.0
  %v106 = vadd.f32 %v103, 1.0
  %v107 = vrcp.pop %v104
  %v108 = vmul.f32 %v104, %v107
  %v109 = vsub.f32 1.0, %v108
  %v110 = vmul.f32 %v107, %v109
  %v111 = vadd.f32 %v107, %v110
  %vm112 = vweird.f32 %v104
  %vm113 = vweird.f32 %v107
  %vm114 = vmor %vm112, %vm113
  %v115 = vsel %vm114, %v107, %v111
  %v116 = vand.u32 2147483647, %v104
  %vm117 = vcmp.eq.f32.partialorder %v116, 8.507059e+37
  %v118 = vand.u32 %v104, 2147483648
  %v119 = vor.u32 1.1754944e-38, %v118
  %v120 = vsel %vm117, %v119, %v115
  %v121 = vmul.f32 1.0, %v120
  %v122 = vrcp.pop %v105
  %v123 = vmul.f32 %v105, %v122
  %v124 = vsub.f32 1.0, %v123
  %v125 = vmul.f32 %v122, %v124
  %v126 = vadd.f32 %v122, %v125
  %vm127 = vweird.f32 %v105
  %vm128 = vweird.f32 %v122
  %vm129 = vmor %vm127, %vm128
  %v130 = vsel %vm129, %v122, %v126
  %v131 = vand.u32 2147483647, %v105
  %vm132 = vcmp.eq.f32.partialorder %v131, 8.507059e+37
  %v133 = vand.u32 %v105, 2147483648
  %v134 = vor.u32 1.1754944e-38, %v133
  %v135 = vsel %vm132, %v134, %v130
  %v136 = vmul.f32 1.0, %v135
  %v137 = vrcp.pop %v106
  %v138 = vmul.f32 %v106, %v137
  %v139 = vsub.f32 1.0, %v138
  %v140 = vmul.f32 %v137, %v139
  %v141 = vadd.f32 %v137, %v140
  %vm142 = vweird.f32 %v106
  %vm143 = vweird.f32 %v137
  %vm144 = vmor %vm142, %vm143
  %v145 = vsel %vm144, %v137, %v141
  %v146 = vand.u32 2147483647, %v106
  %vm147 = vcmp.eq.f32.partialorder %v146, 8.507059e+37
  %v148 = vand.u32 %v106, 2147483648
  %v149 = vor.u32 1.1754944e-38, %v148
  %v150 = vsel %vm147, %v149, %v145
  %v151 = vmul.f32 1.0, %v150
  %v152 = vmul.f32 %v61, %v121
  %v153 = vmul.f32 %v64, %v136
  %v154 = vmul.f32 %v67, %v151
  %v155 = vmul.f32 %v152, %v87
  %v156 = vmul.f32 %v153, %v90
  %v157 = vmul.f32 %v154, %v93
  %v158 = vld [vmem:[#allocation2] sm:$0xff]
  %v159 = vld [vmem:[#allocation2 + $0x8] sm:$0xff]
  %v160 = vld [vmem:[#allocation2 + $0x10] sm:$0xff]
  %v161 = vld [vmem:[%s2] sm:$0xff]
  %v162 = vld [vmem:[%s2 + $0x8] sm:$0xff]
  %v163 = vld [vmem:[%s2 + $0x10] sm:$0xff]
  %v164 = vld [vmem:[%s2 + $0x18] sm:$0xff]
  %v165 = vld [vmem:[%s2 + $0x20] sm:$0xff]
  %v166 = vld [vmem:[%s2 + $0x28] sm:$0xff]
  %v167 = vld [vmem:[%s2 + $0x30] sm:$0xff]
  %v168 = vld [vmem:[%s2 + $0x38] sm:$0xff]
  %v169 = vld [vmem:[%s2 + $0x40] sm:$0xff]
  %v170 = vld [vmem:[%s2 + $0x48] sm:$0xff]
  %v171 = vld [vmem:[%s2 + $0x50] sm:$0xff]
  %v172 = vld [vmem:[%s2 + $0x58] sm:$0xff]
  %v173 = vld [vmem:[%s2 + $0x60] sm:$0xff]
  %v174 = vld [vmem:[%s2 + $0x68] sm:$0xff]
  %v175 = vld [vmem:[%s2 + $0x70] sm:$0xff]
  %v176 = vld [vmem:[%s2 + $0x78] sm:$0xff]
  %177 = vmatpush.msra.mxu0 %v176
  %178 = vmatpush.msra.mxu0 %v175
  %179 = vmatpush.msra.mxu0 %v174
  %180 = vmatpush.msra.mxu0 %v173
  %181 = vmatpush.msra.mxu0 %v172
  %182 = vmatpush.msra.mxu0 %v171
  %183 = vmatpush.msra.mxu0 %v170
  %184 = vmatpush.msra.mxu0 %v169
  %185 = vmatpush.msra.mxu0 %v168
  %186 = vmatpush.msra.mxu0 %v167
  %187 = vmatpush.msra.mxu0 %v166
  %188 = vmatpush.msra.mxu0 %v165
  %189 = vmatpush.msra.mxu0 %v164
  %190 = vmatpush.msra.mxu0 %v163
  %191 = vmatpush.msra.mxu0 %v162
  %192 = vmatpush.msra.mxu0 %v161
  %193 = vmatmul.f32.gmra.mxu0 %v155
  %v194 = vpop.f32.mrf.mxu0
  %v195 = vadd.f32 0.0, %v194
  %196 = vmatmul.f32.gmra.mxu0 %v156
  %v197 = vpop.f32.mrf.mxu0
  %v198 = vadd.f32 0.0, %v197
  %199 = vmatmul.f32.gmra.mxu0 %v157
  %v200 = vpop.f32.mrf.mxu0
  %v201 = vadd.f32 0.0, %v200
  %202 = vdwg.mxu0
  %v203 = vadd.f32 %v158, %v195
  %v204 = vadd.f32 %v159, %v198
  %v205 = vadd.f32 %v160, %v201
  %206 = vst.msk [vmem:[#allocation2] sm:$0xff] %vm33, %v203
  %207 = vst.msk [vmem:[#allocation2 + $0x8] sm:$0xff] %vm33, %v204
  %208 = vst.msk [vmem:[#allocation2 + $0x10] sm:$0xff] %vm33, %v205
  // Predicated region
  $region18: #{mistral_mlp_fused.1} parent=0 // pred_check
    %p209 = pneg %p14
  $region19: #{mistral_mlp_fused.1} parent=0 // pred_check_branch
    %211 = sbr.rel (%p209) target = $region21
  $region20: #{mistral_mlp_fused.1} parent=0 // pred_region
    %v212 = vld [vmem:[#allocation2] sm:$0xff]
    %v213 = vld [vmem:[#allocation2 + $0x8] sm:$0xff]
    %v214 = vld [vmem:[#allocation2 + $0x10] sm:$0xff]
    %215 = vst.msk [vmem:[%s3] sm:$0xff] %vm33, %v212
    %216 = vst.msk [vmem:[%s3 + $0x8] sm:$0xff] %vm33, %v213
    %217 = vst.msk [vmem:[%s3 + $0x10] sm:$0xff] %vm33, %v214
  $region21: #{mistral_mlp_fused.1} parent=0 // pred_fallthru
    _
  // Predicated region
  $region22: #{mistral_mlp_fused.1} parent=0 // pred_check
    _
  $region23: #{mistral_mlp_fused.1} parent=0 // pred_check_branch
    %219 = sbr.rel (0) target = $region25
  $region24: #{mistral_mlp_fused.1} parent=0 // pred_region
    _
  $region25: #{mistral_mlp_fused.1} parent=0 // pred_fallthru
    _
  // Predicated region
  $region26: #{mistral_mlp_fused.1} parent=0 // pred_check
    _
  $region27: #{mistral_mlp_fused.1} parent=0 // pred_check_branch
    %221 = sbr.rel (0) target = $region29
  $region28: #{mistral_mlp_fused.1} parent=0 // pred_region
    _
  $region29: #{mistral_mlp_fused.1} parent=0 // pred_fallthru
    _

</llo_original>
